<compile_context>
chip_gen: v5e
topology: v5e:2x2
jax: 0.10.0
libtpu: 0.0.40
codegen_flags: <defaults>
</compile_context>

<pallas_src>
import functools

import jax
import jax.numpy as jnp
from jax import lax
from jax.experimental import pallas as pl
from jax.experimental.pallas import tpu as pltpu

_LANES = 128


def _ende_kernel(beta_ref, sird_ref, out_ref, *,
                 future_u_length, target_step, recover_rate, death_rate):
    bb = out_ref.shape[2]                      # lanes in this batch block

    # ---- destructure SIRD channels once; each is (1, bb), lanes = batch -----
    s = sird_ref[0:1, :]
    i = sird_ref[1:2, :]
    rr = sird_ref[2:3, :]
    d = sird_ref[3:4, :]
    n = sird_ref[4:5, :]

    inv_n = 1.0 / n                            # hoisted: N constant over steps
    i_keep = 1.0 - recover_rate - death_rate   # folded at trace time (Python)

    # ---- hoisted slab-packing constants (loop invariant) --------------------
    row = lax.broadcasted_iota(jnp.int32, (8, bb), 0)
    m_s = row == 0
    m_i = row == 1
    m_r = row == 2
    m_d = row == 3
    base = jnp.where(row == 4, n, 0.0)         # constant rows: N + zero padding

    def pack(s, i, rr, d):
        # Build one (8, bb) slab [s, i, rr, d, N, 0, 0, 0] with VPU selects so
        # the write below is a single aligned full-sublane store.
        return jnp.where(m_s, s,
               jnp.where(m_i, i,
               jnp.where(m_r, rr,
               jnp.where(m_d, d, base))))

    def sird_step(s, i, rr, d, bon):
        # bon == beta_day / N  (pre-scaled).  Critical chain: mul, mul, add/sub.
        si = s * i * bon
        rr = rr + i * recover_rate             # off the critical chain
        d = d + i * death_rate                 # off the critical chain
        s_new = s - si
        i_new = i * i_keep + si
        return s_new, i_new, rr, d

    # ---- loop 1: one step per forecast day, each with its own beta ----------
    # future_u_length is a small hyper-parameter; static unroll with scalar
    # SMEM reads of beta[day].
    for day in range(future_u_length):
        bon = beta_ref[day] * inv_n                                   # (1, bb)
        s, i, rr, d = sird_step(s, i, rr, d, bon)

    # ---- loop 2: (target_step - 1) steps reusing the last beta --------------
    bon_last = beta_ref[future_u_length - 1] * inv_n                  # (1, bb)
    n_foo = target_step - 1

    def body(item, carry):
        s, i, rr, d = carry
        s, i, rr, d = sird_step(s, i, rr, d, bon_last)
        out_ref[item, :, :] = pack(s, i, rr, d)    # one aligned (8,bb) store
        return s, i, rr, d

    s, i, rr, d = lax.fori_loop(0, n_foo, body, (s, i, rr, d),
                                unroll=max(1, min(8, n_foo)))

    # Final state always written to the last row: guarantees the whole output
    # buffer is initialized even when target_step == 1 (no stale VMEM).
    out_ref[target_step - 1, :, :] = pack(s, i, rr, d)


@functools.partial(
    jax.jit,
    static_argnames=("recover_rate", "death_rate",
                     "future_u_length", "target_step"))
def ende_forward(history_u, sird, fc_weight, fc_bias, *,
                 recover_rate, death_rate, future_u_length, target_step):
    """Returns (x_final [B,1,5], x_foo stacked [target_step-1, B, 1, 5])."""
    assert future_u_length >= 1, "future_u_length must be >= 1"
    assert target_step >= 1, "target_step must be >= 1"

    B = sird.shape[0]
    T = int(target_step)
    F = int(future_u_length)

    # beta computed with plain XLA in the wrapper (removes the padded MXU
    # matmul + sigmoid from the kernel prologue).  Only batch 0 / seq 0 of
    # history_u feeds beta (matches the PyTorch reference).
    h0 = history_u[0, 0, :].astype(jnp.float32)                       # (H,)
    r = h0 @ fc_weight.astype(jnp.float32).T + fc_bias.astype(jnp.float32)
    beta = jax.nn.sigmoid(r)                                          # (F,)

    sird_f32 = sird.astype(jnp.float32)                               # (B, 1, 5)
    sird_cm = jnp.transpose(sird_f32[:, 0, :])                        # (5, B)

    # Pad batch lanes to a multiple of 128 so state vregs / stores are
    # lane-dense (pad value 1.0 keeps the padded-lane dynamics finite).
    pB = -(-B // _LANES) * _LANES
    if pB != B:
        sird_cm = jnp.pad(sird_cm, ((0, 0), (0, pB - B)),
                          constant_values=1.0)
    nb = pB // _LANES

    kernel = functools.partial(
        _ende_kernel,
        future_u_length=F,
        target_step=T,
        recover_rate=float(recover_rate),
        death_rate=float(death_rate),
    )

    out = pl.pallas_call(
        kernel,
        out_shape=jax.ShapeDtypeStruct((T, 8, pB), jnp.float32),
        grid=(nb,),
        in_specs=[
            pl.BlockSpec(memory_space=pltpu.MemorySpace.SMEM),        # beta (F,)
            pl.BlockSpec((5, _LANES), lambda b: (0, b)),              # sird block
        ],
        out_specs=pl.BlockSpec((T, 8, _LANES), lambda b: (0, 0, b)),
        compiler_params=pltpu.CompilerParams(
            dimension_semantics=("parallel",)),                       # v7x 2-TC
    )(beta, sird_cm)                                                  # (T, 8, pB)

    # Wrapper-side layout plumbing (all under jit): the kernel already wrote
    # the N channel, so no concatenate here -- just slice + transpose.
    packed = jnp.transpose(out[:, :5, :B], (0, 2, 1))[:, :, None, :]  # (T,B,1,5)
    x_final = packed[T - 1]                                           # (B, 1, 5)
    x_foo = packed[:T - 1]                                            # (T-1,B,1,5)
    return x_final, x_foo


def _reference_forward(history_u, sird, fc_weight, fc_bias, *,
                       recover_rate, death_rate, future_u_length, target_step):
    """Pure-JAX mirror of the PyTorch forward for correctness checking."""
    r = jnp.einsum("bsh,fh->bsf", history_u, fc_weight) + fc_bias
    beta = jax.nn.sigmoid(r[0, 0, :])                                 # (F,)

    def step(x, bd):
        s, i, rr, d, n = jnp.split(x, 5, axis=2)
        si = s * i * bd / n
        ir = i * recover_rate
        idd = i * death_rate
        rr = rr + ir
        d = d + idd
        s = s - si
        i = i + si - ir - idd
        return jnp.concatenate([s, i, rr, d, n], axis=2)

    x = sird
    for day in range(future_u_length):
        x = step(x, beta[day])
    foo = []
    for _ in range(target_step - 1):
        x = step(x, beta[-1])
        foo.append(x)
    return x, foo


if __name__ == "__main__":
    # Model hyper-parameters (hidden_size is unused by the module's forward).
    recover_rate = 0.03
    death_rate = 0.01
    history_length = 8
    future_u_length = 4
    hidden_size = 32  # noqa: F841  (unused, matching the PyTorch module)
    target_step = 6

    B = 2
    key = jax.random.PRNGKey(0)
    k_hist, k_sird, k_w, k_b = jax.random.split(key, 4)

    # Inputs: history_u [B, 1, H]; sird [B, 1, 5] with strictly positive N.
    history_u = jax.random.normal(k_hist, (B, 1, history_length), jnp.float32)
    sird_base = jax.random.uniform(k_sird, (B, 1, 5), jnp.float32,
                                   minval=10.0, maxval=100.0)
    sird = sird_base.at[:, :, 4:5].set(1000.0)   # N largest -> stable dynamics

    # Deterministic fc parameters: Linear(history_length, future_u_length).
    fc_weight = 0.1 * jax.random.normal(
        k_w, (future_u_length, history_length), jnp.float32)
    fc_bias = 0.1 * jax.random.normal(k_b, (future_u_length,), jnp.float32)

    x_final, x_foo = ende_forward(
        history_u, sird, fc_weight, fc_bias,
        recover_rate=recover_rate, death_rate=death_rate,
        future_u_length=future_u_length, target_step=target_step)
    jax.block_until_ready(x_final)
    jax.block_until_ready(x_foo)

    # Correctness check against a pure-JAX reference mirroring PyTorch.
    ref_x, ref_foo = _reference_forward(
        history_u, sird, fc_weight, fc_bias,
        recover_rate=recover_rate, death_rate=death_rate,
        future_u_length=future_u_length, target_step=target_step)

    assert x_final.shape == (B, 1, 5)
    assert x_foo.shape == (target_step - 1, B, 1, 5)
    assert jnp.allclose(x_final, ref_x, rtol=1e-5, atol=1e-5)
    ref_foo_stacked = jnp.stack(ref_foo, axis=0)
    assert jnp.allclose(x_foo, ref_foo_stacked, rtol=1e-5, atol=1e-5)

    print("KERNEL_OK")
</pallas_src>

<mosaic_0001>
module attributes {stable_mosaic.version = 11 : i64} {
  func.func @_ende_kernel(%arg0: i32, %arg1: memref<4xf32, #tpu.memory_space<smem>>, %arg2: memref<5x128xf32, #tpu.memory_space<vmem>>, %arg3: memref<6x8x128xf32, #tpu.memory_space<vmem>>) attributes {dimension_semantics = [#tpu.dimension_semantics<parallel>], iteration_bounds = array<i64: 1>, scalar_prefetch = 0 : i64, scratch_operands = 0 : i64, tpu.core_type = #tpu.core_type<tc>, window_params = [{transform_indices = @transform_0, window_bounds = array<i64: 4>}, {transform_indices = @transform_1, window_bounds = array<i64: 5, 128>}, {transform_indices = @transform_2, window_bounds = array<i64: 6, 8, 128>}]} {
    %c0 = arith.constant 0 : index
    %c0_0 = arith.constant 0 : index
    %0 = vector.load %arg2[%c0, %c0_0] : memref<5x128xf32, #tpu.memory_space<vmem>>, vector<1x128xf32>
    %c1 = arith.constant 1 : index
    %c0_1 = arith.constant 0 : index
    %1 = vector.load %arg2[%c1, %c0_1] : memref<5x128xf32, #tpu.memory_space<vmem>>, vector<1x128xf32>
    %c2 = arith.constant 2 : index
    %c0_2 = arith.constant 0 : index
    %2 = vector.load %arg2[%c2, %c0_2] : memref<5x128xf32, #tpu.memory_space<vmem>>, vector<1x128xf32>
    %c3 = arith.constant 3 : index
    %c0_3 = arith.constant 0 : index
    %3 = vector.load %arg2[%c3, %c0_3] : memref<5x128xf32, #tpu.memory_space<vmem>>, vector<1x128xf32>
    %c4 = arith.constant 4 : index
    %c0_4 = arith.constant 0 : index
    %4 = vector.load %arg2[%c4, %c0_4] : memref<5x128xf32, #tpu.memory_space<vmem>>, vector<1x128xf32>
    %cst = arith.constant 1.000000e+00 : f32
    %5 = vector.broadcast %cst : f32 to vector<1x128xf32>
    %6 = arith.divf %5, %4 : vector<1x128xf32>
    %7 = tpu.iota {dimensions = array<i32: 0>} : vector<8x128xi32>
    %c0_i32 = arith.constant 0 : i32
    %8 = vector.broadcast %c0_i32 : i32 to vector<8x128xi32>
    %9 = arith.cmpi eq, %7, %8 : vector<8x128xi32>
    %c1_i32 = arith.constant 1 : i32
    %10 = vector.broadcast %c1_i32 : i32 to vector<8x128xi32>
    %11 = arith.cmpi eq, %7, %10 : vector<8x128xi32>
    %c2_i32 = arith.constant 2 : i32
    %12 = vector.broadcast %c2_i32 : i32 to vector<8x128xi32>
    %13 = arith.cmpi eq, %7, %12 : vector<8x128xi32>
    %c3_i32 = arith.constant 3 : i32
    %14 = vector.broadcast %c3_i32 : i32 to vector<8x128xi32>
    %15 = arith.cmpi eq, %7, %14 : vector<8x128xi32>
    %c4_i32 = arith.constant 4 : i32
    %16 = vector.broadcast %c4_i32 : i32 to vector<8x128xi32>
    %17 = arith.cmpi eq, %7, %16 : vector<8x128xi32>
    %cst_5 = arith.constant 0.000000e+00 : f32
    %18 = vector.shape_cast %4 : vector<1x128xf32> to vector<1x128xf32>
    %19 = vector.broadcast %18 : vector<1x128xf32> to vector<8x128xf32>
    %20 = vector.broadcast %cst_5 : f32 to vector<8x128xf32>
    %21 = arith.select %17, %19, %20 : vector<8x128xi1>, vector<8x128xf32>
    %c0_6 = arith.constant 0 : index
    %22 = memref.load %arg1[%c0_6] : memref<4xf32, #tpu.memory_space<smem>>
    %23 = vector.broadcast %22 : f32 to vector<1x128xf32>
    %24 = arith.mulf %23, %6 : vector<1x128xf32>
    %25 = arith.mulf %0, %1 : vector<1x128xf32>
    %26 = arith.mulf %25, %24 : vector<1x128xf32>
    %cst_7 = arith.constant 3.000000e-02 : f32
    %27 = vector.broadcast %cst_7 : f32 to vector<1x128xf32>
    %28 = arith.mulf %1, %27 : vector<1x128xf32>
    %29 = arith.addf %2, %28 : vector<1x128xf32>
    %cst_8 = arith.constant 0.00999999977 : f32
    %30 = vector.broadcast %cst_8 : f32 to vector<1x128xf32>
    %31 = arith.mulf %1, %30 : vector<1x128xf32>
    %32 = arith.addf %3, %31 : vector<1x128xf32>
    %33 = arith.subf %0, %26 : vector<1x128xf32>
    %cst_9 = arith.constant 0.959999978 : f32
    %34 = vector.broadcast %cst_9 : f32 to vector<1x128xf32>
    %35 = arith.mulf %1, %34 : vector<1x128xf32>
    %36 = arith.addf %35, %26 : vector<1x128xf32>
    %c1_10 = arith.constant 1 : index
    %37 = memref.load %arg1[%c1_10] : memref<4xf32, #tpu.memory_space<smem>>
    %38 = vector.broadcast %37 : f32 to vector<1x128xf32>
    %39 = arith.mulf %38, %6 : vector<1x128xf32>
    %40 = arith.mulf %33, %36 : vector<1x128xf32>
    %41 = arith.mulf %40, %39 : vector<1x128xf32>
    %cst_11 = arith.constant 3.000000e-02 : f32
    %42 = vector.broadcast %cst_11 : f32 to vector<1x128xf32>
    %43 = arith.mulf %36, %42 : vector<1x128xf32>
    %44 = arith.addf %29, %43 : vector<1x128xf32>
    %cst_12 = arith.constant 0.00999999977 : f32
    %45 = vector.broadcast %cst_12 : f32 to vector<1x128xf32>
    %46 = arith.mulf %36, %45 : vector<1x128xf32>
    %47 = arith.addf %32, %46 : vector<1x128xf32>
    %48 = arith.subf %33, %41 : vector<1x128xf32>
    %cst_13 = arith.constant 0.959999978 : f32
    %49 = vector.broadcast %cst_13 : f32 to vector<1x128xf32>
    %50 = arith.mulf %36, %49 : vector<1x128xf32>
    %51 = arith.addf %50, %41 : vector<1x128xf32>
    %c2_14 = arith.constant 2 : index
    %52 = memref.load %arg1[%c2_14] : memref<4xf32, #tpu.memory_space<smem>>
    %53 = vector.broadcast %52 : f32 to vector<1x128xf32>
    %54 = arith.mulf %53, %6 : vector<1x128xf32>
    %55 = arith.mulf %48, %51 : vector<1x128xf32>
    %56 = arith.mulf %55, %54 : vector<1x128xf32>
    %cst_15 = arith.constant 3.000000e-02 : f32
    %57 = vector.broadcast %cst_15 : f32 to vector<1x128xf32>
    %58 = arith.mulf %51, %57 : vector<1x128xf32>
    %59 = arith.addf %44, %58 : vector<1x128xf32>
    %cst_16 = arith.constant 0.00999999977 : f32
    %60 = vector.broadcast %cst_16 : f32 to vector<1x128xf32>
    %61 = arith.mulf %51, %60 : vector<1x128xf32>
    %62 = arith.addf %47, %61 : vector<1x128xf32>
    %63 = arith.subf %48, %56 : vector<1x128xf32>
    %cst_17 = arith.constant 0.959999978 : f32
    %64 = vector.broadcast %cst_17 : f32 to vector<1x128xf32>
    %65 = arith.mulf %51, %64 : vector<1x128xf32>
    %66 = arith.addf %65, %56 : vector<1x128xf32>
    %c3_18 = arith.constant 3 : index
    %67 = memref.load %arg1[%c3_18] : memref<4xf32, #tpu.memory_space<smem>>
    %68 = vector.broadcast %67 : f32 to vector<1x128xf32>
    %69 = arith.mulf %68, %6 : vector<1x128xf32>
    %70 = arith.mulf %63, %66 : vector<1x128xf32>
    %71 = arith.mulf %70, %69 : vector<1x128xf32>
    %cst_19 = arith.constant 3.000000e-02 : f32
    %72 = vector.broadcast %cst_19 : f32 to vector<1x128xf32>
    %73 = arith.mulf %66, %72 : vector<1x128xf32>
    %74 = arith.addf %59, %73 : vector<1x128xf32>
    %cst_20 = arith.constant 0.00999999977 : f32
    %75 = vector.broadcast %cst_20 : f32 to vector<1x128xf32>
    %76 = arith.mulf %66, %75 : vector<1x128xf32>
    %77 = arith.addf %62, %76 : vector<1x128xf32>
    %78 = arith.subf %63, %71 : vector<1x128xf32>
    %cst_21 = arith.constant 0.959999978 : f32
    %79 = vector.broadcast %cst_21 : f32 to vector<1x128xf32>
    %80 = arith.mulf %66, %79 : vector<1x128xf32>
    %81 = arith.addf %80, %71 : vector<1x128xf32>
    %c3_22 = arith.constant 3 : index
    %82 = memref.load %arg1[%c3_22] : memref<4xf32, #tpu.memory_space<smem>>
    %83 = vector.broadcast %82 : f32 to vector<1x128xf32>
    %84 = arith.mulf %83, %6 : vector<1x128xf32>
    %c0_i32_23 = arith.constant 0 : i32
    %85 = arith.mulf %78, %81 : vector<1x128xf32>
    %86 = arith.mulf %85, %84 : vector<1x128xf32>
    %cst_24 = arith.constant 3.000000e-02 : f32
    %87 = vector.broadcast %cst_24 : f32 to vector<1x128xf32>
    %88 = arith.mulf %81, %87 : vector<1x128xf32>
    %89 = arith.addf %74, %88 : vector<1x128xf32>
    %cst_25 = arith.constant 0.00999999977 : f32
    %90 = vector.broadcast %cst_25 : f32 to vector<1x128xf32>
    %91 = arith.mulf %81, %90 : vector<1x128xf32>
    %92 = arith.addf %77, %91 : vector<1x128xf32>
    %93 = arith.subf %78, %86 : vector<1x128xf32>
    %cst_26 = arith.constant 0.959999978 : f32
    %94 = vector.broadcast %cst_26 : f32 to vector<1x128xf32>
    %95 = arith.mulf %81, %94 : vector<1x128xf32>
    %96 = arith.addf %95, %86 : vector<1x128xf32>
    %97 = vector.shape_cast %92 : vector<1x128xf32> to vector<1x128xf32>
    %98 = vector.broadcast %97 : vector<1x128xf32> to vector<8x128xf32>
    %99 = arith.select %15, %98, %21 : vector<8x128xi1>, vector<8x128xf32>
    %100 = vector.shape_cast %89 : vector<1x128xf32> to vector<1x128xf32>
    %101 = vector.broadcast %100 : vector<1x128xf32> to vector<8x128xf32>
    %102 = arith.select %13, %101, %99 : vector<8x128xi1>, vector<8x128xf32>
    %103 = vector.shape_cast %96 : vector<1x128xf32> to vector<1x128xf32>
    %104 = vector.broadcast %103 : vector<1x128xf32> to vector<8x128xf32>
    %105 = arith.select %11, %104, %102 : vector<8x128xi1>, vector<8x128xf32>
    %106 = vector.shape_cast %93 : vector<1x128xf32> to vector<1x128xf32>
    %107 = vector.broadcast %106 : vector<1x128xf32> to vector<8x128xf32>
    %108 = arith.select %9, %107, %105 : vector<8x128xi1>, vector<8x128xf32>
    %109 = arith.index_cast %c0_i32_23 : i32 to index
    %c0_27 = arith.constant 0 : index
    %c0_28 = arith.constant 0 : index
    %110 = vector.load %arg3[%109, %c0_27, %c0_28] : memref<6x8x128xf32, #tpu.memory_space<vmem>>, vector<1x8x128xf32>
    %111 = vector.shape_cast %110 : vector<1x8x128xf32> to vector<8x128xf32>
    %112 = vector.shape_cast %108 : vector<8x128xf32> to vector<1x8x128xf32>
    tpu.vector_store %arg3[%109, %c0_27, %c0_28], %112 {strides = array<i32>} : memref<6x8x128xf32, #tpu.memory_space<vmem>>, vector<1x8x128xf32>,
    %c1_i32_29 = arith.constant 1 : i32
    %113 = arith.mulf %93, %96 : vector<1x128xf32>
    %114 = arith.mulf %113, %84 : vector<1x128xf32>
    %cst_30 = arith.constant 3.000000e-02 : f32
    %115 = vector.broadcast %cst_30 : f32 to vector<1x128xf32>
    %116 = arith.mulf %96, %115 : vector<1x128xf32>
    %117 = arith.addf %89, %116 : vector<1x128xf32>
    %cst_31 = arith.constant 0.00999999977 : f32
    %118 = vector.broadcast %cst_31 : f32 to vector<1x128xf32>
    %119 = arith.mulf %96, %118 : vector<1x128xf32>
    %120 = arith.addf %92, %119 : vector<1x128xf32>
    %121 = arith.subf %93, %114 : vector<1x128xf32>
    %cst_32 = arith.constant 0.959999978 : f32
    %122 = vector.broadcast %cst_32 : f32 to vector<1x128xf32>
    %123 = arith.mulf %96, %122 : vector<1x128xf32>
    %124 = arith.addf %123, %114 : vector<1x128xf32>
    %125 = vector.shape_cast %120 : vector<1x128xf32> to vector<1x128xf32>
    %126 = vector.broadcast %125 : vector<1x128xf32> to vector<8x128xf32>
    %127 = arith.select %15, %126, %21 : vector<8x128xi1>, vector<8x128xf32>
    %128 = vector.shape_cast %117 : vector<1x128xf32> to vector<1x128xf32>
    %129 = vector.broadcast %128 : vector<1x128xf32> to vector<8x128xf32>
    %130 = arith.select %13, %129, %127 : vector<8x128xi1>, vector<8x128xf32>
    %131 = vector.shape_cast %124 : vector<1x128xf32> to vector<1x128xf32>
    %132 = vector.broadcast %131 : vector<1x128xf32> to vector<8x128xf32>
    %133 = arith.select %11, %132, %130 : vector<8x128xi1>, vector<8x128xf32>
    %134 = vector.shape_cast %121 : vector<1x128xf32> to vector<1x128xf32>
    %135 = vector.broadcast %134 : vector<1x128xf32> to vector<8x128xf32>
    %136 = arith.select %9, %135, %133 : vector<8x128xi1>, vector<8x128xf32>
    %137 = arith.index_cast %c1_i32_29 : i32 to index
    %c0_33 = arith.constant 0 : index
    %c0_34 = arith.constant 0 : index
    %138 = vector.load %arg3[%137, %c0_33, %c0_34] : memref<6x8x128xf32, #tpu.memory_space<vmem>>, vector<1x8x128xf32>
    %139 = vector.shape_cast %138 : vector<1x8x128xf32> to vector<8x128xf32>
    %140 = vector.shape_cast %136 : vector<8x128xf32> to vector<1x8x128xf32>
    tpu.vector_store %arg3[%137, %c0_33, %c0_34], %140 {strides = array<i32>} : memref<6x8x128xf32, #tpu.memory_space<vmem>>, vector<1x8x128xf32>,
    %c2_i32_35 = arith.constant 2 : i32
    %141 = arith.mulf %121, %124 : vector<1x128xf32>
    %142 = arith.mulf %141, %84 : vector<1x128xf32>
    %cst_36 = arith.constant 3.000000e-02 : f32
    %143 = vector.broadcast %cst_36 : f32 to vector<1x128xf32>
    %144 = arith.mulf %124, %143 : vector<1x128xf32>
    %145 = arith.addf %117, %144 : vector<1x128xf32>
    %cst_37 = arith.constant 0.00999999977 : f32
    %146 = vector.broadcast %cst_37 : f32 to vector<1x128xf32>
    %147 = arith.mulf %124, %146 : vector<1x128xf32>
    %148 = arith.addf %120, %147 : vector<1x128xf32>
    %149 = arith.subf %121, %142 : vector<1x128xf32>
    %cst_38 = arith.constant 0.959999978 : f32
    %150 = vector.broadcast %cst_38 : f32 to vector<1x128xf32>
    %151 = arith.mulf %124, %150 : vector<1x128xf32>
    %152 = arith.addf %151, %142 : vector<1x128xf32>
    %153 = vector.shape_cast %148 : vector<1x128xf32> to vector<1x128xf32>
    %154 = vector.broadcast %153 : vector<1x128xf32> to vector<8x128xf32>
    %155 = arith.select %15, %154, %21 : vector<8x128xi1>, vector<8x128xf32>
    %156 = vector.shape_cast %145 : vector<1x128xf32> to vector<1x128xf32>
    %157 = vector.broadcast %156 : vector<1x128xf32> to vector<8x128xf32>
    %158 = arith.select %13, %157, %155 : vector<8x128xi1>, vector<8x128xf32>
    %159 = vector.shape_cast %152 : vector<1x128xf32> to vector<1x128xf32>
    %160 = vector.broadcast %159 : vector<1x128xf32> to vector<8x128xf32>
    %161 = arith.select %11, %160, %158 : vector<8x128xi1>, vector<8x128xf32>
    %162 = vector.shape_cast %149 : vector<1x128xf32> to vector<1x128xf32>
    %163 = vector.broadcast %162 : vector<1x128xf32> to vector<8x128xf32>
    %164 = arith.select %9, %163, %161 : vector<8x128xi1>, vector<8x128xf32>
    %165 = arith.index_cast %c2_i32_35 : i32 to index
    %c0_39 = arith.constant 0 : index
    %c0_40 = arith.constant 0 : index
    %166 = vector.load %arg3[%165, %c0_39, %c0_40] : memref<6x8x128xf32, #tpu.memory_space<vmem>>, vector<1x8x128xf32>
    %167 = vector.shape_cast %166 : vector<1x8x128xf32> to vector<8x128xf32>
    %168 = vector.shape_cast %164 : vector<8x128xf32> to vector<1x8x128xf32>
    tpu.vector_store %arg3[%165, %c0_39, %c0_40], %168 {strides = array<i32>} : memref<6x8x128xf32, #tpu.memory_space<vmem>>, vector<1x8x128xf32>,
    %c3_i32_41 = arith.constant 3 : i32
    %169 = arith.mulf %149, %152 : vector<1x128xf32>
    %170 = arith.mulf %169, %84 : vector<1x128xf32>
    %cst_42 = arith.constant 3.000000e-02 : f32
    %171 = vector.broadcast %cst_42 : f32 to vector<1x128xf32>
    %172 = arith.mulf %152, %171 : vector<1x128xf32>
    %173 = arith.addf %145, %172 : vector<1x128xf32>
    %cst_43 = arith.constant 0.00999999977 : f32
    %174 = vector.broadcast %cst_43 : f32 to vector<1x128xf32>
    %175 = arith.mulf %152, %174 : vector<1x128xf32>
    %176 = arith.addf %148, %175 : vector<1x128xf32>
    %177 = arith.subf %149, %170 : vector<1x128xf32>
    %cst_44 = arith.constant 0.959999978 : f32
    %178 = vector.broadcast %cst_44 : f32 to vector<1x128xf32>
    %179 = arith.mulf %152, %178 : vector<1x128xf32>
    %180 = arith.addf %179, %170 : vector<1x128xf32>
    %181 = vector.shape_cast %176 : vector<1x128xf32> to vector<1x128xf32>
    %182 = vector.broadcast %181 : vector<1x128xf32> to vector<8x128xf32>
    %183 = arith.select %15, %182, %21 : vector<8x128xi1>, vector<8x128xf32>
    %184 = vector.shape_cast %173 : vector<1x128xf32> to vector<1x128xf32>
    %185 = vector.broadcast %184 : vector<1x128xf32> to vector<8x128xf32>
    %186 = arith.select %13, %185, %183 : vector<8x128xi1>, vector<8x128xf32>
    %187 = vector.shape_cast %180 : vector<1x128xf32> to vector<1x128xf32>
    %188 = vector.broadcast %187 : vector<1x128xf32> to vector<8x128xf32>
    %189 = arith.select %11, %188, %186 : vector<8x128xi1>, vector<8x128xf32>
    %190 = vector.shape_cast %177 : vector<1x128xf32> to vector<1x128xf32>
    %191 = vector.broadcast %190 : vector<1x128xf32> to vector<8x128xf32>
    %192 = arith.select %9, %191, %189 : vector<8x128xi1>, vector<8x128xf32>
    %193 = arith.index_cast %c3_i32_41 : i32 to index
    %c0_45 = arith.constant 0 : index
    %c0_46 = arith.constant 0 : index
    %194 = vector.load %arg3[%193, %c0_45, %c0_46] : memref<6x8x128xf32, #tpu.memory_space<vmem>>, vector<1x8x128xf32>
    %195 = vector.shape_cast %194 : vector<1x8x128xf32> to vector<8x128xf32>
    %196 = vector.shape_cast %192 : vector<8x128xf32> to vector<1x8x128xf32>
    tpu.vector_store %arg3[%193, %c0_45, %c0_46], %196 {strides = array<i32>} : memref<6x8x128xf32, #tpu.memory_space<vmem>>, vector<1x8x128xf32>,
    %c4_i32_47 = arith.constant 4 : i32
    %197 = arith.mulf %177, %180 : vector<1x128xf32>
    %198 = arith.mulf %197, %84 : vector<1x128xf32>
    %cst_48 = arith.constant 3.000000e-02 : f32
    %199 = vector.broadcast %cst_48 : f32 to vector<1x128xf32>
    %200 = arith.mulf %180, %199 : vector<1x128xf32>
    %201 = arith.addf %173, %200 : vector<1x128xf32>
    %cst_49 = arith.constant 0.00999999977 : f32
    %202 = vector.broadcast %cst_49 : f32 to vector<1x128xf32>
    %203 = arith.mulf %180, %202 : vector<1x128xf32>
    %204 = arith.addf %176, %203 : vector<1x128xf32>
    %205 = arith.subf %177, %198 : vector<1x128xf32>
    %cst_50 = arith.constant 0.959999978 : f32
    %206 = vector.broadcast %cst_50 : f32 to vector<1x128xf32>
    %207 = arith.mulf %180, %206 : vector<1x128xf32>
    %208 = arith.addf %207, %198 : vector<1x128xf32>
    %209 = vector.shape_cast %204 : vector<1x128xf32> to vector<1x128xf32>
    %210 = vector.broadcast %209 : vector<1x128xf32> to vector<8x128xf32>
    %211 = arith.select %15, %210, %21 : vector<8x128xi1>, vector<8x128xf32>
    %212 = vector.shape_cast %201 : vector<1x128xf32> to vector<1x128xf32>
    %213 = vector.broadcast %212 : vector<1x128xf32> to vector<8x128xf32>
    %214 = arith.select %13, %213, %211 : vector<8x128xi1>, vector<8x128xf32>
    %215 = vector.shape_cast %208 : vector<1x128xf32> to vector<1x128xf32>
    %216 = vector.broadcast %215 : vector<1x128xf32> to vector<8x128xf32>
    %217 = arith.select %11, %216, %214 : vector<8x128xi1>, vector<8x128xf32>
    %218 = vector.shape_cast %205 : vector<1x128xf32> to vector<1x128xf32>
    %219 = vector.broadcast %218 : vector<1x128xf32> to vector<8x128xf32>
    %220 = arith.select %9, %219, %217 : vector<8x128xi1>, vector<8x128xf32>
    %221 = arith.index_cast %c4_i32_47 : i32 to index
    %c0_51 = arith.constant 0 : index
    %c0_52 = arith.constant 0 : index
    %222 = vector.load %arg3[%221, %c0_51, %c0_52] : memref<6x8x128xf32, #tpu.memory_space<vmem>>, vector<1x8x128xf32>
    %223 = vector.shape_cast %222 : vector<1x8x128xf32> to vector<8x128xf32>
    %224 = vector.shape_cast %220 : vector<8x128xf32> to vector<1x8x128xf32>
    tpu.vector_store %arg3[%221, %c0_51, %c0_52], %224 {strides = array<i32>} : memref<6x8x128xf32, #tpu.memory_space<vmem>>, vector<1x8x128xf32>,
    %c5_i32 = arith.constant 5 : i32
    %225 = vector.shape_cast %204 : vector<1x128xf32> to vector<1x128xf32>
    %226 = vector.broadcast %225 : vector<1x128xf32> to vector<8x128xf32>
    %227 = arith.select %15, %226, %21 : vector<8x128xi1>, vector<8x128xf32>
    %228 = vector.shape_cast %201 : vector<1x128xf32> to vector<1x128xf32>
    %229 = vector.broadcast %228 : vector<1x128xf32> to vector<8x128xf32>
    %230 = arith.select %13, %229, %227 : vector<8x128xi1>, vector<8x128xf32>
    %231 = vector.shape_cast %208 : vector<1x128xf32> to vector<1x128xf32>
    %232 = vector.broadcast %231 : vector<1x128xf32> to vector<8x128xf32>
    %233 = arith.select %11, %232, %230 : vector<8x128xi1>, vector<8x128xf32>
    %234 = vector.shape_cast %205 : vector<1x128xf32> to vector<1x128xf32>
    %235 = vector.broadcast %234 : vector<1x128xf32> to vector<8x128xf32>
    %236 = arith.select %9, %235, %233 : vector<8x128xi1>, vector<8x128xf32>
    %c5 = arith.constant 5 : index
    %c0_53 = arith.constant 0 : index
    %c0_54 = arith.constant 0 : index
    %237 = vector.load %arg3[%c5, %c0_53, %c0_54] : memref<6x8x128xf32, #tpu.memory_space<vmem>>, vector<1x8x128xf32>
    %238 = vector.shape_cast %237 : vector<1x8x128xf32> to vector<8x128xf32>
    %239 = vector.shape_cast %236 : vector<8x128xf32> to vector<1x8x128xf32>
    tpu.vector_store %arg3[%c5, %c0_53, %c0_54], %239 {strides = array<i32>} : memref<6x8x128xf32, #tpu.memory_space<vmem>>, vector<1x8x128xf32>,
    return
  }
  func.func @transform_0(%arg0: i32) -> i32 {
    %c0_i32 = arith.constant 0 : i32
    %c0_i32_0 = arith.constant 0 : i32
    return %c0_i32 : i32
  }
  func.func @transform_1(%arg0: i32) -> (i32, i32) {
    %c0_i32 = arith.constant 0 : i32
    %c0_i32_0 = arith.constant 0 : i32
    return %c0_i32, %arg0 : i32, i32
  }
  func.func @transform_2(%arg0: i32) -> (i32, i32, i32) {
    %c0_i32 = arith.constant 0 : i32
    %c0_i32_0 = arith.constant 0 : i32
    %c0_i32_1 = arith.constant 0 : i32
    return %c0_i32, %c0_i32_0, %arg0 : i32, i32, i32
  }
}

</mosaic_0001>

<llo_original>
// kernel: ende_forward.1
$region0: #{ende_forward.1}
  #allocation0 [shape = 'u32[]', space=smem, size = 0x4, offset = 0x4, fixed_abs, tag = 'smem constant byte address 0x4 - core index']
  #allocation1 [shape = 'u32[72,128]{1,0:T(1,128)}', space=vmem, size = 0x9000, scoped, tag = 'internal scratch']
  %s0 = inlined_call_operand.vmem [shape: f32[4], index: 0, kind: input, shape index: {}]
  %s1 = inlined_call_operand.vmem [shape: f32[5,128], index: 1, kind: input, shape index: {}]
  %s2 = inlined_call_operand.vmem [shape: f32[6,8,128], index: 2, kind: output, shape index: {}]
  %s3 = sld [smem:[#allocation0]]
  $region22: #{ende_forward.1} parent=0
    _
  %s5 = ssub.s32 1, %s3
  %s6 = scalar_select 0, %s5, %s3
  $region1: #{ende_forward.1} parent=0
    #allocation2 [shape = 'u8[512]{0}', space=smem, size = 0x200, scoped, tag = 'input window, operand 0, single buffered']
    #allocation3 [shape = 's32[1]{0}', space=sflag, size = 0x4, scoped, tag = 'scoped memory for ende_forward.1']
    %7 = vsyncpa [#allocation3], 0
    // Predicated region
    $region2: #{ende_forward.1} parent=1 // pred_check
      _
    $region3: #{ende_forward.1} parent=1 // pred_check_branch
      %9 = sbr.rel (0) target = $region5
    $region4: #{ende_forward.1} parent=1 // pred_region
      %11 = vsyncadd [#allocation3], 0
      %s13 = sshll.u32 %s0, 4
      %s14 = int_to_ptr.vmem [resolvable:$true] %s13
      %16 = dma.vmem_to_smem %s14, 16, [#allocation2], [#allocation3]
    $region5: #{ende_forward.1} parent=1 // pred_fallthru
      _
    // Predicated region
    $region6: #{ende_forward.1} parent=1 // pred_check
      _
    $region7: #{ende_forward.1} parent=1 // pred_check_branch
      %18 = sbr.rel (0) target = $region9
    $region8: #{ende_forward.1} parent=1 // pred_region
      _
    $region9: #{ende_forward.1} parent=1 // pred_fallthru
      _
    // Predicated region
    $region10: #{ende_forward.1} parent=1 // pred_check
      _
    $region11: #{ende_forward.1} parent=1 // pred_check_branch
      %20 = sbr.rel (0) target = $region13
    $region12: #{ende_forward.1} parent=1 // pred_region
      %22 = dma.done [#allocation3], 16
    $region13: #{ende_forward.1} parent=1 // pred_fallthru
      _
    %23 = sfence
    %v24 = vld [vmem:[%s1] sm:$0x1]
    %v25 = vld [vmem:[%s1 + $0x1] sm:$0x1]
    %v26 = vld [vmem:[%s1 + $0x2] sm:$0x1]
    %v27 = vld [vmem:[%s1 + $0x3] sm:$0x1]
    %v28 = vld [vmem:[%s1 + $0x4] sm:$0x1]
    %v29 = vrcp.pop %v28
    %v30 = vmul.f32 %v28, %v29
    %v31 = vsub.f32 1.0, %v30
    %v32 = vmul.f32 %v29, %v31
    %v33 = vadd.f32 %v29, %v32
    %vm34 = vweird.f32 %v28
    %vm35 = vweird.f32 %v29
    %vm36 = vmor %vm34, %vm35
    %v37 = vsel %vm36, %v29, %v33
    %v38 = vand.u32 2147483647, %v28
    %vm39 = vcmp.eq.f32.partialorder %v38, 8.507059e+37
    %v40 = vand.u32 %v28, 2147483648
    %v41 = vor.u32 1.1754944e-38, %v40
    %v42 = vsel %vm39, %v41, %v37
    %v43 = vmul.f32 1.0, %v42
    %v44 = vlaneseq
    %v45 = vshrl.u32 %v44, 7
    %vm46 = vcmp.eq.s32.totalorder %v45, 0
    %vm47 = vcmp.eq.s32.totalorder %v45, 1
    %vm48 = vcmp.eq.s32.totalorder %v45, 2
    %vm49 = vcmp.eq.s32.totalorder %v45, 3
    %vm50 = vcmp.eq.s32.totalorder %v45, 4
    %v51 = vperm.slane %v28, 0
    %v52 = vsel %vm50, %v51, 0.0
    %s53 = sld [smem:[#allocation2]]
    %v54 = vstv %s53
    %v55 = vmul.f32 %v54, %v43
    %v56 = vmul.f32 %v24, %v25
    %v57 = vmul.f32 %v56, %v55
    %v58 = vmul.f32 %v25, 0.03
    %v59 = vadd.f32 %v26, %v58
    %v60 = vmul.f32 %v25, 0.01
    %v61 = vadd.f32 %v27, %v60
    %v62 = vsub.f32 %v24, %v57
    %v63 = vmul.f32 %v25, 0.96
    %v64 = vadd.f32 %v63, %v57
    %s65 = sld [smem:[#allocation2 + $0x1]]
    %v66 = vstv %s65
    %v67 = vmul.f32 %v66, %v43
    %v68 = vmul.f32 %v62, %v64
    %v69 = vmul.f32 %v68, %v67
    %v70 = vmul.f32 %v64, 0.03
    %v71 = vadd.f32 %v59, %v70
    %v72 = vmul.f32 %v64, 0.01
    %v73 = vadd.f32 %v61, %v72
    %v74 = vsub.f32 %v62, %v69
    %v75 = vmul.f32 %v64, 0.96
    %v76 = vadd.f32 %v75, %v69
    %s77 = sld [smem:[#allocation2 + $0x2]]
    %v78 = vstv %s77
    %v79 = vmul.f32 %v78, %v43
    %v80 = vmul.f32 %v74, %v76
    %v81 = vmul.f32 %v80, %v79
    %v82 = vmul.f32 %v76, 0.03
    %v83 = vadd.f32 %v71, %v82
    %v84 = vmul.f32 %v76, 0.01
    %v85 = vadd.f32 %v73, %v84
    %v86 = vsub.f32 %v74, %v81
    %v87 = vmul.f32 %v76, 0.96
    %v88 = vadd.f32 %v87, %v81
    %s89 = sld [smem:[#allocation2 + $0x3]]
    %v90 = vstv %s89
    %v91 = vmul.f32 %v90, %v43
    %v92 = vmul.f32 %v86, %v88
    %v93 = vmul.f32 %v92, %v91
    %v94 = vmul.f32 %v88, 0.03
    %v95 = vadd.f32 %v83, %v94
    %v96 = vmul.f32 %v88, 0.01
    %v97 = vadd.f32 %v85, %v96
    %v98 = vsub.f32 %v86, %v93
    %v99 = vmul.f32 %v88, 0.96
    %v100 = vadd.f32 %v99, %v93
    %v101 = vmul.f32 %v98, %v100
    %v102 = vmul.f32 %v101, %v91
    %v103 = vmul.f32 %v100, 0.03
    %v104 = vadd.f32 %v95, %v103
    %v105 = vmul.f32 %v100, 0.01
    %v106 = vadd.f32 %v97, %v105
    %v107 = vsub.f32 %v98, %v102
    %v108 = vmul.f32 %v100, 0.96
    %v109 = vadd.f32 %v108, %v102
    %v110 = vperm.slane %v106, 0
    %v111 = vsel %vm49, %v110, %v52
    %v112 = vperm.slane %v104, 0
    %v113 = vsel %vm48, %v112, %v111
    %v114 = vperm.slane %v109, 0
    %v115 = vsel %vm47, %v114, %v113
    %v116 = vperm.slane %v107, 0
    %v117 = vsel %vm46, %v116, %v115
    %118 = vst [vmem:[%s2] sm:$0xff] %v117
    %v119 = vmul.f32 %v107, %v109
    %v120 = vmul.f32 %v119, %v91
    %v121 = vmul.f32 %v109, 0.03
    %v122 = vadd.f32 %v104, %v121
    %v123 = vmul.f32 %v109, 0.01
    %v124 = vadd.f32 %v106, %v123
    %v125 = vsub.f32 %v107, %v120
    %v126 = vmul.f32 %v109, 0.96
    %v127 = vadd.f32 %v126, %v120
    %v128 = vperm.slane %v124, 0
    %v129 = vsel %vm49, %v128, %v52
    %v130 = vperm.slane %v122, 0
    %v131 = vsel %vm48, %v130, %v129
    %v132 = vperm.slane %v127, 0
    %v133 = vsel %vm47, %v132, %v131
    %v134 = vperm.slane %v125, 0
    %v135 = vsel %vm46, %v134, %v133
    %s136 = scalar_lea.vmem %s2, 8
    %137 = vst [vmem:[%s136] sm:$0xff] %v135
    %v138 = vmul.f32 %v125, %v127
    %v139 = vmul.f32 %v138, %v91
    %v140 = vmul.f32 %v127, 0.03
    %v141 = vadd.f32 %v122, %v140
    %v142 = vmul.f32 %v127, 0.01
    %v143 = vadd.f32 %v124, %v142
    %v144 = vsub.f32 %v125, %v139
    %v145 = vmul.f32 %v127, 0.96
    %v146 = vadd.f32 %v145, %v139
    %v147 = vperm.slane %v143, 0
    %v148 = vsel %vm49, %v147, %v52
    %v149 = vperm.slane %v141, 0
    %v150 = vsel %vm48, %v149, %v148
    %v151 = vperm.slane %v146, 0
    %v152 = vsel %vm47, %v151, %v150
    %v153 = vperm.slane %v144, 0
    %v154 = vsel %vm46, %v153, %v152
    %s155 = scalar_lea.vmem %s2, 16
    %156 = vst [vmem:[%s155] sm:$0xff] %v154
    %v157 = vmul.f32 %v144, %v146
    %v158 = vmul.f32 %v157, %v91
    %v159 = vmul.f32 %v146, 0.03
    %v160 = vadd.f32 %v141, %v159
    %v161 = vmul.f32 %v146, 0.01
    %v162 = vadd.f32 %v143, %v161
    %v163 = vsub.f32 %v144, %v158
    %v164 = vmul.f32 %v146, 0.96
    %v165 = vadd.f32 %v164, %v158
    %v166 = vperm.slane %v162, 0
    %v167 = vsel %vm49, %v166, %v52
    %v168 = vperm.slane %v160, 0
    %v169 = vsel %vm48, %v168, %v167
    %v170 = vperm.slane %v165, 0
    %v171 = vsel %vm47, %v170, %v169
    %v172 = vperm.slane %v163, 0
    %v173 = vsel %vm46, %v172, %v171
    %s174 = scalar_lea.vmem %s2, 24
    %175 = vst [vmem:[%s174] sm:$0xff] %v173
    %v176 = vmul.f32 %v163, %v165
    %v177 = vmul.f32 %v176, %v91
    %v178 = vmul.f32 %v165, 0.03
    %v179 = vadd.f32 %v160, %v178
    %v180 = vmul.f32 %v165, 0.01
    %v181 = vadd.f32 %v162, %v180
    %v182 = vsub.f32 %v163, %v177
    %v183 = vmul.f32 %v165, 0.96
    %v184 = vadd.f32 %v183, %v177
    %v185 = vperm.slane %v181, 0
    %v186 = vsel %vm49, %v185, %v52
    %v187 = vperm.slane %v179, 0
    %v188 = vsel %vm48, %v187, %v186
    %v189 = vperm.slane %v184, 0
    %v190 = vsel %vm47, %v189, %v188
    %v191 = vperm.slane %v182, 0
    %v192 = vsel %vm46, %v191, %v190
    %s193 = scalar_lea.vmem %s2, 32
    %194 = vst [vmem:[%s193] sm:$0xff] %v192
    %s195 = scalar_lea.vmem %s2, 40
    %196 = vst [vmem:[%s195] sm:$0xff] %v192
    // Predicated region
    $region14: #{ende_forward.1} parent=1 // pred_check
      _
    $region15: #{ende_forward.1} parent=1 // pred_check_branch
      %198 = sbr.rel (0) target = $region17
    $region16: #{ende_forward.1} parent=1 // pred_region
      _
    $region17: #{ende_forward.1} parent=1 // pred_fallthru
      _
    // Predicated region
    $region18: #{ende_forward.1} parent=1 // pred_check
      _
    $region19: #{ende_forward.1} parent=1 // pred_check_branch
      %200 = sbr.rel (0) target = $region21
    $region20: #{ende_forward.1} parent=1 // pred_region
      _
    $region21: #{ende_forward.1} parent=1 // pred_fallthru
      _
    %201 = vsyncpa [#allocation3], 1

</llo_original>
